<compile_context>
chip_gen: v7x
topology: tpu7x:2x2x1
jax: 0.10.0
libtpu: 0.0.40
codegen_flags: <defaults>
</compile_context>

<pallas_src>
import functools

import jax
import jax.numpy as jnp
from jax.experimental import pallas as pl
from jax.experimental.pallas import tpu as pltpu


VMEM_BUDGET = 40 * 1024 * 1024   # target double-buffered working set for the agg kernels
VMEM_LIMIT = 48 * 1024 * 1024    # scoped VMEM limit (> v5e 16 MiB default, < v7x 64 MiB phys)


# ---------------------------------------------------------------------------
# Kernels
# ---------------------------------------------------------------------------

def proj_kernel(x_ref, wl_ref, wr_ref, b_ref, p_ref, r_ref):
    """Per-row-tile projections for a SAGE layer.

    p = x @ Wl        (to be aggregated by A later; stored bf16 for the MXU A-matmul)
    r = x @ Wr + b    (self/root path; fp32)
    """
    xb = x_ref[...].astype(jnp.bfloat16)
    p = jnp.dot(xb, wl_ref[...], preferred_element_type=jnp.float32)
    p_ref[...] = p.astype(p_ref.dtype)
    r_ref[...] = (jnp.dot(xb, wr_ref[...], preferred_element_type=jnp.float32)
                  + b_ref[...]).astype(r_ref.dtype)


def agg_relu_proj_kernel(a_ref, p_ref, r_ref, inv_ref, wl2_ref, wr2_ref, b2_ref,
                         p2_ref, r2_ref, acc_ref, *, tk, p_resident):
    """Layer-1 aggregation + ReLU, fused with the layer-2 projections.

    acc_i = sum_k A01[i, k] @ p1[k]         (int8 A cast to bf16, fp32 accumulate)
    h_i   = relu(inv_deg_i * acc_i + r1_i)  (exact fp32 mean scale)
    p2_i  = h_i @ Wl2 (bf16)                r2_i = h_i @ Wr2 + b2 (fp32)
    """
    k = pl.program_id(1)
    if p_resident:
        start = pl.multiple_of(k * tk, tk)
        p = p_ref[pl.ds(start, tk), :]
    else:
        p = p_ref[...]
    prod = jnp.dot(a_ref[...].astype(jnp.bfloat16), p,
                   preferred_element_type=jnp.float32)

    @pl.when(k == 0)
    def _():
        acc_ref[...] = prod

    @pl.when(k != 0)
    def _():
        acc_ref[...] += prod

    @pl.when(k == pl.num_programs(1) - 1)
    def _():
        h = jnp.maximum(acc_ref[...] * inv_ref[...] + r_ref[...], 0.0)
        hb = h.astype(jnp.bfloat16)
        p2_ref[...] = jnp.dot(hb, wl2_ref[...],
                              preferred_element_type=jnp.float32).astype(p2_ref.dtype)
        r2_ref[...] = (jnp.dot(hb, wr2_ref[...],
                               preferred_element_type=jnp.float32)
                       + b2_ref[...]).astype(r2_ref.dtype)


def agg_final_kernel(a_ref, p_ref, r_ref, inv_ref, o_ref, acc_ref, *, tk, p_resident):
    """Layer-2 aggregation: out_i = inv_deg_i * sum_k A01[i, k] @ p2[k] + r2_i."""
    k = pl.program_id(1)
    if p_resident:
        start = pl.multiple_of(k * tk, tk)
        p = p_ref[pl.ds(start, tk), :]
    else:
        p = p_ref[...]
    prod = jnp.dot(a_ref[...].astype(jnp.bfloat16), p,
                   preferred_element_type=jnp.float32)

    @pl.when(k == 0)
    def _():
        acc_ref[...] = prod

    @pl.when(k != 0)
    def _():
        acc_ref[...] += prod

    @pl.when(k == pl.num_programs(1) - 1)
    def _():
        o_ref[...] = (acc_ref[...] * inv_ref[...] + r_ref[...]).astype(o_ref.dtype)


# ---------------------------------------------------------------------------
# Wrapper helpers
# ---------------------------------------------------------------------------

def _round_up(n, m):
    return ((n + m - 1) // m) * m


def _pad_to(arr, shape):
    return jnp.pad(arr, [(0, s - d) for d, s in zip(arr.shape, shape)])


def _largest_tile(n, cap):
    """Largest multiple of 128 that divides n and is <= cap (at least 128)."""
    best = 128
    t = 128
    limit = min(n, max(cap, 128))
    while t <= limit:
        if n % t == 0:
            best = t
        t += 128
    return best


def _choose_agg_tiles(n_pad, h_p, o_p, budget=VMEM_BUDGET):
    """VMEM-budget-aware tile selection for the two aggregation kernels."""
    # Row tile: 128/256 already fills the MXU on every generation; keep >= 2 row tiles so
    # the "parallel" axis can still be split across TensorCores (v7x megacore).
    tm = 256 if (n_pad % 256 == 0 and n_pad // 256 >= 2) else 128
    width = max(h_p, o_p)

    # Keep the small contraction operand (p1/p2, bf16) resident in VMEM when it fits.
    p_bytes = n_pad * width * 2
    p_resident = 2 * p_bytes <= budget // 2

    # Fixed (tk-independent) VMEM costs, double-buffered where pipelined.
    fixed = (2 * p_bytes if p_resident else 0)
    fixed += 2 * 2 * h_p * o_p * 2          # Wl2 + Wr2 (bf16)
    fixed += 2 * tm * width * 4             # r row tile (f32)
    fixed += 2 * tm * o_p * (2 + 4)         # p2 (bf16) + r2 (f32) outputs
    fixed += tm * width * 4                 # fp32 accumulator scratch
    fixed += 2 * tm * 4                     # inv_deg row tile

    avail = max(budget - fixed, 2 * tm * 128)
    # Per unit of tk: A tile (int8, 2 buffers) + (if not resident) p tile (bf16, 2 buffers).
    per_tk = 2 * tm + (0 if p_resident else 2 * width * 2)
    tk = _largest_tile(n_pad, avail // per_tk)
    return tm, tk, p_resident


def _projection(x_p, wl, wr, b, tm):
    n_pad, cin_p = x_p.shape
    cout_p = wl.shape[1]
    return pl.pallas_call(
        proj_kernel,
        out_shape=(jax.ShapeDtypeStruct((n_pad, cout_p), jnp.bfloat16),
                   jax.ShapeDtypeStruct((n_pad, cout_p), jnp.float32)),
        grid_spec=pltpu.PrefetchScalarGridSpec(
            num_scalar_prefetch=0,
            grid=(n_pad // tm,),
            in_specs=[
                pl.BlockSpec((tm, cin_p), lambda i: (i, 0)),      # x row tile (f32)
                pl.BlockSpec((cin_p, cout_p), lambda i: (0, 0)),  # Wl (bf16)
                pl.BlockSpec((cin_p, cout_p), lambda i: (0, 0)),  # Wr (bf16)
                pl.BlockSpec((1, cout_p), lambda i: (0, 0)),      # bias (f32)
            ],
            out_specs=[
                pl.BlockSpec((tm, cout_p), lambda i: (i, 0)),     # p (bf16)
                pl.BlockSpec((tm, cout_p), lambda i: (i, 0)),     # r (f32)
            ]),
        compiler_params=pltpu.CompilerParams(
            dimension_semantics=("parallel",),
            vmem_limit_bytes=VMEM_LIMIT),
    )(x_p, wl, wr, b)


def _agg_relu_proj(a_p, p1, r1, inv_p, wl2, wr2, b2, tm, tk, p_resident):
    n_pad = a_p.shape[0]
    h_p = p1.shape[1]
    o_p = wl2.shape[1]

    if p_resident:
        p_spec = pl.BlockSpec((n_pad, h_p), lambda i, k: (0, 0))   # resident, fetched once
        p_reads = n_pad * h_p * 2
    else:
        p_spec = pl.BlockSpec((tk, h_p), lambda i, k: (k, 0))
        p_reads = (n_pad // tm) * n_pad * h_p * 2

    flops = 2 * n_pad * n_pad * h_p + 4 * n_pad * h_p * o_p
    bytes_accessed = (n_pad * n_pad                      # A (int8), streamed once
                      + p_reads
                      + n_pad * h_p * 4                  # r1
                      + n_pad * 4                        # inv_deg
                      + n_pad * o_p * (2 + 4))           # p2 (bf16) + r2 (f32) outputs

    kernel = functools.partial(agg_relu_proj_kernel, tk=tk, p_resident=p_resident)
    return pl.pallas_call(
        kernel,
        out_shape=(jax.ShapeDtypeStruct((n_pad, o_p), jnp.bfloat16),
                   jax.ShapeDtypeStruct((n_pad, o_p), jnp.float32)),
        grid_spec=pltpu.PrefetchScalarGridSpec(
            num_scalar_prefetch=0,
            grid=(n_pad // tm, n_pad // tk),
            in_specs=[
                pl.BlockSpec((tm, tk), lambda i, k: (i, k)),      # A tile (int8)
                p_spec,                                           # p1 (bf16)
                pl.BlockSpec((tm, h_p), lambda i, k: (i, 0)),     # r1 row tile (f32)
                pl.BlockSpec((tm, 1), lambda i, k: (i, 0)),       # 1/deg row tile (f32)
                pl.BlockSpec((h_p, o_p), lambda i, k: (0, 0)),    # Wl2 (bf16)
                pl.BlockSpec((h_p, o_p), lambda i, k: (0, 0)),    # Wr2 (bf16)
                pl.BlockSpec((1, o_p), lambda i, k: (0, 0)),      # b2 (f32)
            ],
            out_specs=[
                pl.BlockSpec((tm, o_p), lambda i, k: (i, 0)),     # p2 (bf16)
                pl.BlockSpec((tm, o_p), lambda i, k: (i, 0)),     # r2 (f32)
            ],
            scratch_shapes=[pltpu.VMEM((tm, h_p), jnp.float32)]),
        compiler_params=pltpu.CompilerParams(
            dimension_semantics=("parallel", "arbitrary"),
            vmem_limit_bytes=VMEM_LIMIT),
        cost_estimate=pl.CostEstimate(flops=flops, transcendentals=0,
                                      bytes_accessed=bytes_accessed),
    )(a_p, p1, r1, inv_p, wl2, wr2, b2)


def _agg_final(a_p, p2, r2, inv_p, tm, tk, p_resident):
    n_pad = a_p.shape[0]
    o_p = p2.shape[1]

    if p_resident:
        p_spec = pl.BlockSpec((n_pad, o_p), lambda i, k: (0, 0))
        p_reads = n_pad * o_p * 2
    else:
        p_spec = pl.BlockSpec((tk, o_p), lambda i, k: (k, 0))
        p_reads = (n_pad // tm) * n_pad * o_p * 2

    flops = 2 * n_pad * n_pad * o_p
    bytes_accessed = (n_pad * n_pad
                      + p_reads
                      + n_pad * o_p * 4
                      + n_pad * 4
                      + n_pad * o_p * 4)

    kernel = functools.partial(agg_final_kernel, tk=tk, p_resident=p_resident)
    return pl.pallas_call(
        kernel,
        out_shape=jax.ShapeDtypeStruct((n_pad, o_p), jnp.float32),
        grid_spec=pltpu.PrefetchScalarGridSpec(
            num_scalar_prefetch=0,
            grid=(n_pad // tm, n_pad // tk),
            in_specs=[
                pl.BlockSpec((tm, tk), lambda i, k: (i, k)),      # A tile (int8)
                p_spec,                                           # p2 (bf16)
                pl.BlockSpec((tm, o_p), lambda i, k: (i, 0)),     # r2 row tile (f32)
                pl.BlockSpec((tm, 1), lambda i, k: (i, 0)),       # 1/deg row tile (f32)
            ],
            out_specs=pl.BlockSpec((tm, o_p), lambda i, k: (i, 0)),
            scratch_shapes=[pltpu.VMEM((tm, o_p), jnp.float32)]),
        compiler_params=pltpu.CompilerParams(
            dimension_semantics=("parallel", "arbitrary"),
            vmem_limit_bytes=VMEM_LIMIT),
        cost_estimate=pl.CostEstimate(flops=flops, transcendentals=0,
                                      bytes_accessed=bytes_accessed),
    )(a_p, p2, r2, inv_p)


# ---------------------------------------------------------------------------
# Full forward
# ---------------------------------------------------------------------------

def graphsage_autoencoder(x, edge_index, params):
    """x: [N, Cin] float32, edge_index: [2, E] int32 (row 0 = src, row 1 = dst)."""
    N, Cin = x.shape
    H = params["wl1"].shape[1]
    O = params["wl2"].shape[1]
    src, dst = edge_index[0], edge_index[1]

    # Pad to lane-dense / tile-friendly sizes.
    n_pad = _round_up(N, 128)
    cin_p = _round_up(Cin, 128)
    h_p = _round_up(H, 128)
    o_p = _round_up(O, 128)

    # 0/1 adjacency (edge counts) scattered directly into the padded int8 buffer; the exact
    # fp32 1/in_deg row scale is applied inside the kernels (not baked into A).
    a01 = jnp.zeros((n_pad, n_pad), jnp.int8).at[dst, src].add(
        jnp.ones_like(dst, dtype=jnp.int8))
    deg = jnp.zeros((N,), jnp.float32).at[dst].add(1.0)       # O(E) segment sum
    inv_deg = jnp.where(deg > 0, 1.0 / jnp.maximum(deg, 1.0), 0.0)
    inv_p = _pad_to(inv_deg[:, None], (n_pad, 1))

    x_p = _pad_to(x.astype(jnp.float32), (n_pad, cin_p))
    wl1 = _pad_to(params["wl1"], (cin_p, h_p)).astype(jnp.bfloat16)
    wr1 = _pad_to(params["wr1"], (cin_p, h_p)).astype(jnp.bfloat16)
    bl1 = _pad_to(params["bl1"], (1, h_p))
    wl2 = _pad_to(params["wl2"], (h_p, o_p)).astype(jnp.bfloat16)
    wr2 = _pad_to(params["wr2"], (h_p, o_p)).astype(jnp.bfloat16)
    bl2 = _pad_to(params["bl2"], (1, o_p))

    tm, tk, p_resident = _choose_agg_tiles(n_pad, h_p, o_p)

    # Layer-1 projections: p1 = x@Wl1 (bf16), r1 = x@Wr1 + b1 (f32).
    p1, r1 = _projection(x_p, wl1, wr1, bl1, tm)
    # Layer-1 aggregation (+1/deg scale) + ReLU, fused with layer-2 projections.
    p2, r2 = _agg_relu_proj(a01, p1, r1, inv_p, wl2, wr2, bl2, tm, tk, p_resident)
    # Layer-2 aggregation (+1/deg scale) + residual.
    out_p = _agg_final(a01, p2, r2, inv_p, tm, tk, p_resident)

    return out_p[:N, :O]


# ---------------------------------------------------------------------------
# Parameters & pure-JAX reference
# ---------------------------------------------------------------------------

def init_params(key, in_channels, hidden_channels, out_channels):
    """Deterministic synthetic weights. Stored pre-transposed: W has shape [C_in, C_out]."""
    k1, k2, k3, k4, k5, k6 = jax.random.split(key, 6)
    s1 = 1.0 / jnp.sqrt(in_channels)
    s2 = 1.0 / jnp.sqrt(hidden_channels)
    return {
        "wl1": jax.random.uniform(k1, (in_channels, hidden_channels), jnp.float32, -s1, s1),
        "bl1": jax.random.uniform(k5, (1, hidden_channels), jnp.float32, -s1, s1),
        "wr1": jax.random.uniform(k2, (in_channels, hidden_channels), jnp.float32, -s1, s1),
        "wl2": jax.random.uniform(k3, (hidden_channels, out_channels), jnp.float32, -s2, s2),
        "bl2": jax.random.uniform(k6, (1, out_channels), jnp.float32, -s2, s2),
        "wr2": jax.random.uniform(k4, (hidden_channels, out_channels), jnp.float32, -s2, s2),
    }


def reference_forward(x, edge_index, params):
    """Pure-JAX fp32 reference of the same semantics (sanity check)."""
    N = x.shape[0]
    src, dst = edge_index[0], edge_index[1]
    adj = jnp.zeros((N, N), jnp.float32).at[dst, src].add(1.0)
    deg = jnp.sum(adj, axis=1, keepdims=True)
    a = jnp.where(deg > 0, adj / jnp.maximum(deg, 1.0), 0.0)
    h = jnp.maximum(a @ x @ params["wl1"] + params["bl1"] + x @ params["wr1"], 0.0)
    return a @ h @ params["wl2"] + params["bl2"] + h @ params["wr2"]


if __name__ == "__main__":
    key = jax.random.PRNGKey(0)
    kx, kp = jax.random.split(key)

    N, IN_C, HID_C, OUT_C = 8, 4, 32, 16

    # Node features [N, in_channels]
    x = jax.random.normal(kx, (N, IN_C), jnp.float32)

    # Deterministic edge list (ring + a few extra edges), shape [2, E]
    src = jnp.array([0, 1, 2, 3, 4, 5, 6, 7, 0, 2, 5], dtype=jnp.int32)
    dst = jnp.array([1, 2, 3, 4, 5, 6, 7, 0, 4, 6, 1], dtype=jnp.int32)
    edge_index = jnp.stack([src, dst], axis=0)

    params = init_params(kp, IN_C, HID_C, OUT_C)

    out = graphsage_autoencoder(x, edge_index, params)
    out = jax.block_until_ready(out)

    ref = reference_forward(x, edge_index, params)
    assert out.shape == (N, OUT_C)
    # Projected features / weights are bf16 on the MXU (fp32 accumulate, exact fp32 1/deg
    # scale), so compare against the fp32 reference with a bf16-appropriate tolerance.
    assert jnp.allclose(out, ref, atol=2e-2, rtol=2e-2), float(jnp.max(jnp.abs(out - ref)))

    print("KERNEL_OK")
</pallas_src>

<mosaic_0001>
module attributes {stable_mosaic.version = 11 : i64} {
  func.func @proj_kernel(%arg0: i32, %arg1: memref<128x128xf32, #tpu.memory_space<vmem>>, %arg2: memref<128x128xbf16, #tpu.memory_space<vmem>>, %arg3: memref<128x128xbf16, #tpu.memory_space<vmem>>, %arg4: memref<1x128xf32, #tpu.memory_space<vmem>>, %arg5: memref<128x128xbf16, #tpu.memory_space<vmem>>, %arg6: memref<128x128xf32, #tpu.memory_space<vmem>>) attributes {dimension_semantics = [#tpu.dimension_semantics<parallel>], iteration_bounds = array<i64: 1>, scalar_prefetch = 0 : i64, scratch_operands = 0 : i64, tpu.core_type = #tpu.core_type<tc>, window_params = [{transform_indices = @transform_0, window_bounds = array<i64: 128, 128>}, {pipeline_mode = #tpu.pipeline_mode<synchronous>, transform_indices = @transform_1, window_bounds = array<i64: 128, 128>}, {pipeline_mode = #tpu.pipeline_mode<synchronous>, transform_indices = @transform_2, window_bounds = array<i64: 128, 128>}, {pipeline_mode = #tpu.pipeline_mode<synchronous>, transform_indices = @transform_3, window_bounds = array<i64: 1, 128>}, {transform_indices = @transform_4, window_bounds = array<i64: 128, 128>}, {transform_indices = @transform_5, window_bounds = array<i64: 128, 128>}]} {
    %c0 = arith.constant 0 : index
    %c0_0 = arith.constant 0 : index
    %0 = vector.load %arg1[%c0, %c0_0] : memref<128x128xf32, #tpu.memory_space<vmem>>, vector<128x128xf32>
    %1 = arith.truncf %0 : vector<128x128xf32> to vector<128x128xbf16>
    %c0_1 = arith.constant 0 : index
    %c0_2 = arith.constant 0 : index
    %2 = vector.load %arg2[%c0_1, %c0_2] : memref<128x128xbf16, #tpu.memory_space<vmem>>, vector<128x128xbf16>
    %cst = arith.constant dense<0.000000e+00> : vector<128x128xf32>
    %3 = tpu.matmul %1, %2, %cst {dimension_numbers = #tpu.dot_dimension_numbers<[1], [0], [0], [1], [0, 0, 1, 1], [], []>} : vector<128x128xbf16>, vector<128x128xbf16>, vector<128x128xf32> -> vector<128x128xf32>
    %4 = arith.truncf %3 : vector<128x128xf32> to vector<128x128xbf16>
    %c0_3 = arith.constant 0 : index
    %c0_4 = arith.constant 0 : index
    %5 = vector.load %arg5[%c0_3, %c0_4] : memref<128x128xbf16, #tpu.memory_space<vmem>>, vector<128x128xbf16>
    tpu.vector_store %arg5[%c0_3, %c0_4], %4 {strides = array<i32>} : memref<128x128xbf16, #tpu.memory_space<vmem>>, vector<128x128xbf16>,
    %c0_5 = arith.constant 0 : index
    %c0_6 = arith.constant 0 : index
    %6 = vector.load %arg3[%c0_5, %c0_6] : memref<128x128xbf16, #tpu.memory_space<vmem>>, vector<128x128xbf16>
    %cst_7 = arith.constant dense<0.000000e+00> : vector<128x128xf32>
    %7 = tpu.matmul %1, %6, %cst_7 {dimension_numbers = #tpu.dot_dimension_numbers<[1], [0], [0], [1], [0, 0, 1, 1], [], []>} : vector<128x128xbf16>, vector<128x128xbf16>, vector<128x128xf32> -> vector<128x128xf32>
    %c0_8 = arith.constant 0 : index
    %c0_9 = arith.constant 0 : index
    %8 = vector.load %arg4[%c0_8, %c0_9] : memref<1x128xf32, #tpu.memory_space<vmem>>, vector<1x128xf32>
    %9 = vector.broadcast %8 : vector<1x128xf32> to vector<128x128xf32>
    %10 = arith.addf %7, %9 : vector<128x128xf32>
    %c0_10 = arith.constant 0 : index
    %c0_11 = arith.constant 0 : index
    %11 = vector.load %arg6[%c0_10, %c0_11] : memref<128x128xf32, #tpu.memory_space<vmem>>, vector<128x128xf32>
    tpu.vector_store %arg6[%c0_10, %c0_11], %10 {strides = array<i32>} : memref<128x128xf32, #tpu.memory_space<vmem>>, vector<128x128xf32>,
    return
  }
  func.func @transform_0(%arg0: i32) -> (i32, i32) {
    %c0_i32 = arith.constant 0 : i32
    %c0_i32_0 = arith.constant 0 : i32
    return %arg0, %c0_i32 : i32, i32
  }
  func.func @transform_1(%arg0: i32) -> (i32, i32) {
    %c0_i32 = arith.constant 0 : i32
    %c0_i32_0 = arith.constant 0 : i32
    %c0_i32_1 = arith.constant 0 : i32
    return %c0_i32, %c0_i32_0 : i32, i32
  }
  func.func @transform_2(%arg0: i32) -> (i32, i32) {
    %c0_i32 = arith.constant 0 : i32
    %c0_i32_0 = arith.constant 0 : i32
    %c0_i32_1 = arith.constant 0 : i32
    return %c0_i32, %c0_i32_0 : i32, i32
  }
  func.func @transform_3(%arg0: i32) -> (i32, i32) {
    %c0_i32 = arith.constant 0 : i32
    %c0_i32_0 = arith.constant 0 : i32
    %c0_i32_1 = arith.constant 0 : i32
    return %c0_i32, %c0_i32_0 : i32, i32
  }
  func.func @transform_4(%arg0: i32) -> (i32, i32) {
    %c0_i32 = arith.constant 0 : i32
    %c0_i32_0 = arith.constant 0 : i32
    return %arg0, %c0_i32 : i32, i32
  }
  func.func @transform_5(%arg0: i32) -> (i32, i32) {
    %c0_i32 = arith.constant 0 : i32
    %c0_i32_0 = arith.constant 0 : i32
    return %arg0, %c0_i32 : i32, i32
  }
}

</mosaic_0001>

<llo_original>
// kernel: tpu_custom_call.1
$region0: #{tpu_custom_call.1}
  #allocation0 [shape = 'u32[]', space=smem, size = 0x4, offset = 0x4, fixed_abs, tag = 'smem constant byte address 0x4 - core index']
  #allocation1 [shape = 'u32[144,128]{1,0:T(1,128)}', space=vmem, size = 0x12000, scoped, tag = 'internal scratch']
  %s0 = inlined_call_operand.hbm [shape: f32[128,128], index: 0, kind: input, shape index: {}]
  %s1 = inlined_call_operand.hbm [shape: bf16[128,128], index: 1, kind: input, shape index: {}]
  %s2 = inlined_call_operand.hbm [shape: bf16[128,128], index: 2, kind: input, shape index: {}]
  %s3 = inlined_call_operand.vmem [shape: f32[1,128], index: 3, kind: input, shape index: {}]
  %s4 = inlined_call_operand.hbm [shape: bf16[128,128], index: 4, kind: output, shape index: {0}]
  %s5 = inlined_call_operand.hbm [shape: f32[128,128], index: 5, kind: output, shape index: {1}]
  %6 = xla_tuple %s4, %s5
  %s7 = sld [smem:[#allocation0]]
  $region46: #{tpu_custom_call.1} parent=0
    _
  %s9 = ssub.s32 1, %s7
  %s10 = scalar_select 0, %s9, %s7
  $region1: #{tpu_custom_call.1} parent=0
    #allocation2 [shape = 'u8[65536]{0}', space=vmem, size = 0x10000, scoped, tag = 'input window, operand 0, single buffered']
    #allocation3 [shape = 's32[1]{0}', space=sflag, size = 0x4, scoped, tag = 'scoped memory for tpu_custom_call.1']
    #allocation4 [shape = 's32[1]{0}', space=sflag, size = 0x4, scoped, tag = 'scoped memory for tpu_custom_call.1']
    #allocation5 [shape = 'u8[32768]{0}', space=vmem, size = 0x8000, scoped, tag = 'input window, operand 1, single buffered']
    #allocation6 [shape = 's32[1]{0}', space=sflag, size = 0x4, scoped, tag = 'scoped memory for tpu_custom_call.1']
    #allocation7 [shape = 'u8[32768]{0}', space=vmem, size = 0x8000, scoped, tag = 'input window, operand 2, single buffered']
    #allocation8 [shape = 'u8[32768]{0}', space=vmem, size = 0x8000, scoped, tag = 'output window, operand 0, single buffered']
    #allocation9 [shape = 'u8[65536]{0}', space=vmem, size = 0x10000, scoped, tag = 'output window, operand 1, single buffered']
    #allocation10 [shape = 's32[1]{0}', space=sflag, size = 0x4, scoped, tag = 'scoped memory for tpu_custom_call.1']
    %11 = vsyncpa [#allocation3], 0
    %12 = vsyncpa [#allocation6], 0
    %13 = vsyncpa [#allocation4], 0
    %14 = vsyncpa [#allocation10], 0
    // Predicated region
    $region2: #{tpu_custom_call.1} parent=1 // pred_check
      _
    $region3: #{tpu_custom_call.1} parent=1 // pred_check_branch
      %16 = sbr.rel (0) target = $region5
    $region4: #{tpu_custom_call.1} parent=1 // pred_region
      %s18 = ssub.s32 2048, 2048
      %19 = vsyncadd [#allocation3], %s18
      %s20 = sshll.u32 [#allocation2], 4
      %s21 = int_to_ptr.vmem [resolvable:$true] %s20
      %26 = dma.hbm_to_vmem [thread:$0]  %s0, 2048, %s21, [#allocation3], 128, 128, 8
    $region5: #{tpu_custom_call.1} parent=1 // pred_fallthru
      _
    // Predicated region
    $region6: #{tpu_custom_call.1} parent=1 // pred_check
      _
    $region7: #{tpu_custom_call.1} parent=1 // pred_check_branch
      %28 = sbr.rel (0) target = $region9
    $region8: #{tpu_custom_call.1} parent=1 // pred_region
      %s30 = ssub.s32 1024, 1024
      %31 = vsyncadd [#allocation6], %s30
      %s32 = sshll.u32 [#allocation5], 4
      %s33 = int_to_ptr.vmem [resolvable:$true] %s32
      %38 = dma.hbm_to_vmem [thread:$0]  %s1, 1024, %s33, [#allocation6], 64, 64, 4
    $region9: #{tpu_custom_call.1} parent=1 // pred_fallthru
      _
    // Predicated region
    $region10: #{tpu_custom_call.1} parent=1 // pred_check
      _
    $region11: #{tpu_custom_call.1} parent=1 // pred_check_branch
      %40 = sbr.rel (0) target = $region13
    $region12: #{tpu_custom_call.1} parent=1 // pred_region
      %s42 = ssub.s32 1024, 1024
      %43 = vsyncadd [#allocation6], %s42
      %s44 = sshll.u32 [#allocation7], 4
      %s45 = int_to_ptr.vmem [resolvable:$true] %s44
      %50 = dma.hbm_to_vmem [thread:$0]  %s2, 1024, %s45, [#allocation6], 64, 64, 4
    $region13: #{tpu_custom_call.1} parent=1 // pred_fallthru
      _
    // Predicated region
    $region14: #{tpu_custom_call.1} parent=1 // pred_check
      _
    $region15: #{tpu_custom_call.1} parent=1 // pred_check_branch
      %52 = sbr.rel (0) target = $region17
    $region16: #{tpu_custom_call.1} parent=1 // pred_region
      _
    $region17: #{tpu_custom_call.1} parent=1 // pred_fallthru
      _
    // Predicated region
    $region18: #{tpu_custom_call.1} parent=1 // pred_check
      _
    $region19: #{tpu_custom_call.1} parent=1 // pred_check_branch
      %54 = sbr.rel (0) target = $region21
    $region20: #{tpu_custom_call.1} parent=1 // pred_region
      %55 = dma.done [#allocation3], 2048
    $region21: #{tpu_custom_call.1} parent=1 // pred_fallthru
      _
    // Predicated region
    $region22: #{tpu_custom_call.1} parent=1 // pred_check
      _
    $region23: #{tpu_custom_call.1} parent=1 // pred_check_branch
      %57 = sbr.rel (0) target = $region25
    $region24: #{tpu_custom_call.1} parent=1 // pred_region
      %58 = dma.done [#allocation6], 1024
    $region25: #{tpu_custom_call.1} parent=1 // pred_fallthru
      _
    // Predicated region
    $region26: #{tpu_custom_call.1} parent=1 // pred_check
      _
    $region27: #{tpu_custom_call.1} parent=1 // pred_check_branch
      %60 = sbr.rel (0) target = $region29
    $region28: #{tpu_custom_call.1} parent=1 // pred_region
      %61 = dma.done [#allocation6], 1024
    $region29: #{tpu_custom_call.1} parent=1 // pred_fallthru
      _
    %v63 = vld [vmem:[#allocation2] sm:$0xff]
    %v64 = vld [vmem:[#allocation2 + $0x8] sm:$0xff]
    %v65 = vld [vmem:[#allocation2 + $0x10] sm:$0xff]
    %v66 = vld [vmem:[#allocation2 + $0x18] sm:$0xff]
    %v67 = vld [vmem:[#allocation2 + $0x20] sm:$0xff]
    %v68 = vld [vmem:[#allocation2 + $0x28] sm:$0xff]
    %v69 = vld [vmem:[#allocation2 + $0x30] sm:$0xff]
    %v70 = vld [vmem:[#allocation2 + $0x38] sm:$0xff]
    %v71 = vld [vmem:[#allocation2 + $0x40] sm:$0xff]
    %v72 = vld [vmem:[#allocation2 + $0x48] sm:$0xff]
    %v73 = vld [vmem:[#allocation2 + $0x50] sm:$0xff]
    %v74 = vld [vmem:[#allocation2 + $0x58] sm:$0xff]
    %v75 = vld [vmem:[#allocation2 + $0x60] sm:$0xff]
    %v76 = vld [vmem:[#allocation2 + $0x68] sm:$0xff]
    %v77 = vld [vmem:[#allocation2 + $0x70] sm:$0xff]
    %v78 = vld [vmem:[#allocation2 + $0x78] sm:$0xff]
    %v79 = vpack.c.bf16 %v64, %v63
    %v80 = vpack.c.bf16 %v66, %v65
    %v81 = vpack.c.bf16 %v68, %v67
    %v82 = vpack.c.bf16 %v70, %v69
    %v83 = vpack.c.bf16 %v72, %v71
    %v84 = vpack.c.bf16 %v74, %v73
    %v85 = vpack.c.bf16 %v76, %v75
    %v86 = vpack.c.bf16 %v78, %v77
    %v87 = vld [vmem:[#allocation5] sm:$0xf]
    %v88 = vld [vmem:[#allocation5 + $0x4] sm:$0xf]
    %v89 = vld [vmem:[#allocation5 + $0x8] sm:$0xf]
    %v90 = vld [vmem:[#allocation5 + $0xc] sm:$0xf]
    %v91 = vld [vmem:[#allocation5 + $0x10] sm:$0xf]
    %v92 = vld [vmem:[#allocation5 + $0x14] sm:$0xf]
    %v93 = vld [vmem:[#allocation5 + $0x18] sm:$0xf]
    %v94 = vld [vmem:[#allocation5 + $0x1c] sm:$0xf]
    %v95 = vld [vmem:[#allocation5 + $0x20] sm:$0xf]
    %v96 = vld [vmem:[#allocation5 + $0x24] sm:$0xf]
    %v97 = vld [vmem:[#allocation5 + $0x28] sm:$0xf]
    %v98 = vld [vmem:[#allocation5 + $0x2c] sm:$0xf]
    %v99 = vld [vmem:[#allocation5 + $0x30] sm:$0xf]
    %v100 = vld [vmem:[#allocation5 + $0x34] sm:$0xf]
    %v101 = vld [vmem:[#allocation5 + $0x38] sm:$0xf]
    %v102 = vld [vmem:[#allocation5 + $0x3c] sm:$0xf]
    %v119 = vunpack.c.l.b16 %v87
    %v120 = vunpack.c.l.b16 %v88
    %v121 = vunpack.c.l.b16 %v89
    %v122 = vunpack.c.l.b16 %v90
    %v123 = vunpack.c.l.b16 %v91
    %v124 = vunpack.c.l.b16 %v92
    %v125 = vunpack.c.l.b16 %v93
    %v126 = vunpack.c.l.b16 %v94
    %v127 = vunpack.c.l.b16 %v95
    %v128 = vunpack.c.l.b16 %v96
    %v129 = vunpack.c.l.b16 %v97
    %v130 = vunpack.c.l.b16 %v98
    %v131 = vunpack.c.l.b16 %v99
    %v132 = vunpack.c.l.b16 %v100
    %v133 = vunpack.c.l.b16 %v101
    %v134 = vunpack.c.l.b16 %v102
    %v135 = vpack.c.b16 %v120, %v119
    %v136 = vpack.c.b16 %v122, %v121
    %v137 = vpack.c.b16 %v124, %v123
    %v138 = vpack.c.b16 %v126, %v125
    %v139 = vpack.c.b16 %v128, %v127
    %v140 = vpack.c.b16 %v130, %v129
    %v141 = vpack.c.b16 %v132, %v131
    %v142 = vpack.c.b16 %v134, %v133
    %151 = vmatprep.subr.bf16.mxu0 0
    %152 = vmatpush1.bf16.msra.mxu0 %v135
    %153 = vmatprep.subr.bf16.mxu0 0
    %154 = vmatpush1.bf16.msra.mxu0 %v136
    %155 = vmatprep.subr.bf16.mxu0 0
    %156 = vmatpush1.bf16.msra.mxu0 %v137
    %157 = vmatprep.subr.bf16.mxu0 0
    %158 = vmatpush1.bf16.msra.mxu0 %v138
    %159 = vmatprep.subr.bf16.mxu0 0
    %160 = vmatpush1.bf16.msra.mxu0 %v139
    %161 = vmatprep.subr.bf16.mxu0 0
    %162 = vmatpush1.bf16.msra.mxu0 %v140
    %163 = vmatprep.subr.bf16.mxu0 0
    %164 = vmatpush1.bf16.msra.mxu0 %v141
    %165 = vmatprep.subr.bf16.mxu0 0
    %166 = vmatpush1.bf16.msra.mxu0 %v142
    %167 = vmatprep.subr.bf16.mxu0 0
    %168 = vmatpush1.bf16.msra.mxu0 0
    %169 = vmatprep.subr.bf16.mxu0 0
    %170 = vmatpush1.bf16.msra.mxu0 0
    %171 = vmatprep.subr.bf16.mxu0 0
    %172 = vmatpush1.bf16.msra.mxu0 0
    %173 = vmatprep.subr.bf16.mxu0 0
    %174 = vmatpush1.bf16.msra.mxu0 0
    %175 = vmatprep.subr.bf16.mxu0 0
    %176 = vmatpush1.bf16.msra.mxu0 0
    %177 = vmatprep.subr.bf16.mxu0 0
    %178 = vmatpush1.bf16.msra.mxu0 0
    %179 = vmatprep.subr.bf16.mxu0 0
    %180 = vmatpush1.bf16.msra.mxu0 0
    %181 = vmatprep.subr.bf16.mxu0 0
    %182 = vmatpush1.bf16.msra.mxu0 0
    %183 = vmatprep.mubr.bf16.mxu0 0
    %184 = vmatmul.mubr.bf16.gmra.mrb[0].mxu0 %v79
    %v185 = vpop.f32.mrb[0].mxu0
    %v186 = vadd.f32 0.0, %v185
    %v187 = vpop.f32.mrb[0].mxu0
    %v188 = vpop.f32.mrb[0].mxu0
    %v189 = vadd.f32 0.0, %v188
    %v190 = vpop.f32.mrb[0].mxu0
    %191 = vmatprep.mubr.bf16.mxu0 0
    %192 = vmatmul.mubr.bf16.gmra.mrb[0].mxu0 %v80
    %v193 = vpop.f32.mrb[0].mxu0
    %v194 = vadd.f32 0.0, %v193
    %v195 = vpop.f32.mrb[0].mxu0
    %v196 = vpop.f32.mrb[0].mxu0
    %v197 = vadd.f32 0.0, %v196
    %v198 = vpop.f32.mrb[0].mxu0
    %199 = vmatprep.mubr.bf16.mxu0 0
    %200 = vmatmul.mubr.bf16.gmra.mrb[0].mxu0 %v81
    %v201 = vpop.f32.mrb[0].mxu0
    %v202 = vadd.f32 0.0, %v201
    %v203 = vpop.f32.mrb[0].mxu0
    %v204 = vpop.f32.mrb[0].mxu0
    %v205 = vadd.f32 0.0, %v204
    %v206 = vpop.f32.mrb[0].mxu0
    %207 = vmatprep.mubr.bf16.mxu0 0
    %208 = vmatmul.mubr.bf16.gmra.mrb[0].mxu0 %v82
    %v209 = vpop.f32.mrb[0].mxu0
    %v210 = vadd.f32 0.0, %v209
    %v211 = vpop.f32.mrb[0].mxu0
    %v212 = vpop.f32.mrb[0].mxu0
    %v213 = vadd.f32 0.0, %v212
    %v214 = vpop.f32.mrb[0].mxu0
    %215 = vmatprep.mubr.bf16.mxu0 0
    %216 = vmatmul.mubr.bf16.gmra.mrb[0].mxu0 %v83
    %v217 = vpop.f32.mrb[0].mxu0
    %v218 = vadd.f32 0.0, %v217
    %v219 = vpop.f32.mrb[0].mxu0
    %v220 = vpop.f32.mrb[0].mxu0
    %v221 = vadd.f32 0.0, %v220
    %v222 = vpop.f32.mrb[0].mxu0
    %223 = vmatprep.mubr.bf16.mxu0 0
    %224 = vmatmul.mubr.bf16.gmra.mrb[0].mxu0 %v84
    %v225 = vpop.f32.mrb[0].mxu0
    %v226 = vadd.f32 0.0, %v225
    %v227 = vpop.f32.mrb[0].mxu0
    %v228 = vpop.f32.mrb[0].mxu0
    %v229 = vadd.f32 0.0, %v228
    %v230 = vpop.f32.mrb[0].mxu0
    %231 = vmatprep.mubr.bf16.mxu0 0
    %232 = vmatmul.mubr.bf16.gmra.mrb[0].mxu0 %v85
    %v233 = vpop.f32.mrb[0].mxu0
    %v234 = vadd.f32 0.0, %v233
    %v235 = vpop.f32.mrb[0].mxu0
    %v236 = vpop.f32.mrb[0].mxu0
    %v237 = vadd.f32 0.0, %v236
    %v238 = vpop.f32.mrb[0].mxu0
    %239 = vmatprep.mubr.bf16.mxu0 0
    %240 = vmatmul.mubr.bf16.gmra.mrb[0].mxu0 %v86
    %v241 = vpop.f32.mrb[0].mxu0
    %v242 = vadd.f32 0.0, %v241
    %v243 = vpop.f32.mrb[0].mxu0
    %v244 = vpop.f32.mrb[0].mxu0
    %v245 = vadd.f32 0.0, %v244
    %v246 = vpop.f32.mrb[0].mxu0
    %247 = vdwg.mxu0
    %v248 = vpack.c.bf16 %v189, %v186
    %v249 = vpack.c.bf16 %v197, %v194
    %v250 = vpack.c.bf16 %v205, %v202
    %v251 = vpack.c.bf16 %v213, %v210
    %v252 = vpack.c.bf16 %v221, %v218
    %v253 = vpack.c.bf16 %v229, %v226
    %v254 = vpack.c.bf16 %v237, %v234
    %v255 = vpack.c.bf16 %v245, %v242
    %v264 = vunpack.c.l.b16 %v248
    %v265 = vunpack.c.h.b16 %v248
    %v266 = vunpack.c.l.b16 %v249
    %v267 = vunpack.c.h.b16 %v249
    %v268 = vunpack.c.l.b16 %v250
    %v269 = vunpack.c.h.b16 %v250
    %v270 = vunpack.c.l.b16 %v251
    %v271 = vunpack.c.h.b16 %v251
    %v272 = vunpack.c.l.b16 %v252
    %v273 = vunpack.c.h.b16 %v252
    %v274 = vunpack.c.l.b16 %v253
    %v275 = vunpack.c.h.b16 %v253
    %v276 = vunpack.c.l.b16 %v254
    %v277 = vunpack.c.h.b16 %v254
    %v278 = vunpack.c.l.b16 %v255
    %v279 = vunpack.c.h.b16 %v255
    %v280 = vpack.c.b16 %v264, %v264
    %v281 = vpack.c.b16 %v265, %v265
    %v282 = vpack.c.b16 %v266, %v266
    %v283 = vpack.c.b16 %v267, %v267
    %v284 = vpack.c.b16 %v268, %v268
    %v285 = vpack.c.b16 %v269, %v269
    %v286 = vpack.c.b16 %v270, %v270
    %v287 = vpack.c.b16 %v271, %v271
    %v288 = vpack.c.b16 %v272, %v272
    %v289 = vpack.c.b16 %v273, %v273
    %v290 = vpack.c.b16 %v274, %v274
    %v291 = vpack.c.b16 %v275, %v275
    %v292 = vpack.c.b16 %v276, %v276
    %v293 = vpack.c.b16 %v277, %v277
    %v294 = vpack.c.b16 %v278, %v278
    %v295 = vpack.c.b16 %v279, %v279
    %312 = vst [vmem:[#allocation8] sm:$0xf] %v280
    %313 = vst [vmem:[#allocation8 + $0x4] sm:$0xf] %v281
    %314 = vst [vmem:[#allocation8 + $0x8] sm:$0xf] %v282
    %315 = vst [vmem:[#allocation8 + $0xc] sm:$0xf] %v283
    %316 = vst [vmem:[#allocation8 + $0x10] sm:$0xf] %v284
    %317 = vst [vmem:[#allocation8 + $0x14] sm:$0xf] %v285
    %318 = vst [vmem:[#allocation8 + $0x18] sm:$0xf] %v286
    %319 = vst [vmem:[#allocation8 + $0x1c] sm:$0xf] %v287
    %320 = vst [vmem:[#allocation8 + $0x20] sm:$0xf] %v288
    %321 = vst [vmem:[#allocation8 + $0x24] sm:$0xf] %v289
    %322 = vst [vmem:[#allocation8 + $0x28] sm:$0xf] %v290
    %323 = vst [vmem:[#allocation8 + $0x2c] sm:$0xf] %v291
    %324 = vst [vmem:[#allocation8 + $0x30] sm:$0xf] %v292
    %325 = vst [vmem:[#allocation8 + $0x34] sm:$0xf] %v293
    %326 = vst [vmem:[#allocation8 + $0x38] sm:$0xf] %v294
    %327 = vst [vmem:[#allocation8 + $0x3c] sm:$0xf] %v295
    %v328 = vld [vmem:[#allocation7] sm:$0xf]
    %v329 = vld [vmem:[#allocation7 + $0x4] sm:$0xf]
    %v330 = vld [vmem:[#allocation7 + $0x8] sm:$0xf]
    %v331 = vld [vmem:[#allocation7 + $0xc] sm:$0xf]
    %v332 = vld [vmem:[#allocation7 + $0x10] sm:$0xf]
    %v333 = vld [vmem:[#allocation7 + $0x14] sm:$0xf]
    %v334 = vld [vmem:[#allocation7 + $0x18] sm:$0xf]
    %v335 = vld [vmem:[#allocation7 + $0x1c] sm:$0xf]
    %v336 = vld [vmem:[#allocation7 + $0x20] sm:$0xf]
    %v337 = vld [vmem:[#allocation7 + $0x24] sm:$0xf]
    %v338 = vld [vmem:[#allocation7 + $0x28] sm:$0xf]
    %v339 = vld [vmem:[#allocation7 + $0x2c] sm:$0xf]
    %v340 = vld [vmem:[#allocation7 + $0x30] sm:$0xf]
    %v341 = vld [vmem:[#allocation7 + $0x34] sm:$0xf]
    %v342 = vld [vmem:[#allocation7 + $0x38] sm:$0xf]
    %v343 = vld [vmem:[#allocation7 + $0x3c] sm:$0xf]
    %v344 = vld [vmem:[%s3] sm:$0x1]
    %v346 = vlaneseq
    %v347 = vshrl.u32 %v346, 7
    %v348 = vsub.s32 0, %v347
    %v349 = vrot.slane %v344, %v348
    %v367 = vunpack.c.l.b16 %v328
    %v368 = vunpack.c.l.b16 %v329
    %v369 = vunpack.c.l.b16 %v330
    %v370 = vunpack.c.l.b16 %v331
    %v371 = vunpack.c.l.b16 %v332
    %v372 = vunpack.c.l.b16 %v333
    %v373 = vunpack.c.l.b16 %v334
    %v374 = vunpack.c.l.b16 %v335
    %v375 = vunpack.c.l.b16 %v336
    %v376 = vunpack.c.l.b16 %v337
    %v377 = vunpack.c.l.b16 %v338
    %v378 = vunpack.c.l.b16 %v339
    %v379 = vunpack.c.l.b16 %v340
    %v380 = vunpack.c.l.b16 %v341
    %v381 = vunpack.c.l.b16 %v342
    %v382 = vunpack.c.l.b16 %v343
    %v383 = vpack.c.b16 %v368, %v367
    %v384 = vpack.c.b16 %v370, %v369
    %v385 = vpack.c.b16 %v372, %v371
    %v386 = vpack.c.b16 %v374, %v373
    %v387 = vpack.c.b16 %v376, %v375
    %v388 = vpack.c.b16 %v378, %v377
    %v389 = vpack.c.b16 %v380, %v379
    %v390 = vpack.c.b16 %v382, %v381
    %399 = vmatprep.subr.bf16.mxu0 0
    %400 = vmatpush1.bf16.msra.mxu0 %v383
    %401 = vmatprep.subr.bf16.mxu0 0
    %402 = vmatpush1.bf16.msra.mxu0 %v384
    %403 = vmatprep.subr.bf16.mxu0 0
    %404 = vmatpush1.bf16.msra.mxu0 %v385
    %405 = vmatprep.subr.bf16.mxu0 0
    %406 = vmatpush1.bf16.msra.mxu0 %v386
    %407 = vmatprep.subr.bf16.mxu0 0
    %408 = vmatpush1.bf16.msra.mxu0 %v387
    %409 = vmatprep.subr.bf16.mxu0 0
    %410 = vmatpush1.bf16.msra.mxu0 %v388
    %411 = vmatprep.subr.bf16.mxu0 0
    %412 = vmatpush1.bf16.msra.mxu0 %v389
    %413 = vmatprep.subr.bf16.mxu0 0
    %414 = vmatpush1.bf16.msra.mxu0 %v390
    %415 = vmatprep.subr.bf16.mxu0 0
    %416 = vmatpush1.bf16.msra.mxu0 0
    %417 = vmatprep.subr.bf16.mxu0 0
    %418 = vmatpush1.bf16.msra.mxu0 0
    %419 = vmatprep.subr.bf16.mxu0 0
    %420 = vmatpush1.bf16.msra.mxu0 0
    %421 = vmatprep.subr.bf16.mxu0 0
    %422 = vmatpush1.bf16.msra.mxu0 0
    %423 = vmatprep.subr.bf16.mxu0 0
    %424 = vmatpush1.bf16.msra.mxu0 0
    %425 = vmatprep.subr.bf16.mxu0 0
    %426 = vmatpush1.bf16.msra.mxu0 0
    %427 = vmatprep.subr.bf16.mxu0 0
    %428 = vmatpush1.bf16.msra.mxu0 0
    %429 = vmatprep.subr.bf16.mxu0 0
    %430 = vmatpush1.bf16.msra.mxu0 0
    %431 = vmatprep.mubr.bf16.mxu0 0
    %432 = vmatmul.mubr.bf16.gmra.mrb[0].mxu0 %v79
    %v433 = vpop.f32.mrb[0].mxu0
    %v434 = vadd.f32 %v349, %v433
    %v435 = vpop.f32.mrb[0].mxu0
    %v436 = vpop.f32.mrb[0].mxu0
    %v437 = vadd.f32 %v349, %v436
    %v438 = vpop.f32.mrb[0].mxu0
    %439 = vmatprep.mubr.bf16.mxu0 0
    %440 = vmatmul.mubr.bf16.gmra.mrb[0].mxu0 %v80
    %v441 = vpop.f32.mrb[0].mxu0
    %v442 = vadd.f32 %v349, %v441
    %v443 = vpop.f32.mrb[0].mxu0
    %v444 = vpop.f32.mrb[0].mxu0
    %v445 = vadd.f32 %v349, %v444
    %v446 = vpop.f32.mrb[0].mxu0
    %447 = vmatprep.mubr.bf16.mxu0 0
    %448 = vmatmul.mubr.bf16.gmra.mrb[0].mxu0 %v81
    %v449 = vpop.f32.mrb[0].mxu0
    %v450 = vadd.f32 %v349, %v449
    %v451 = vpop.f32.mrb[0].mxu0
    %v452 = vpop.f32.mrb[0].mxu0
    %v453 = vadd.f32 %v349, %v452
    %v454 = vpop.f32.mrb[0].mxu0
    %455 = vmatprep.mubr.bf16.mxu0 0
    %456 = vmatmul.mubr.bf16.gmra.mrb[0].mxu0 %v82
    %v457 = vpop.f32.mrb[0].mxu0
    %v458 = vadd.f32 %v349, %v457
    %v459 = vpop.f32.mrb[0].mxu0
    %v460 = vpop.f32.mrb[0].mxu0
    %v461 = vadd.f32 %v349, %v460
    %v462 = vpop.f32.mrb[0].mxu0
    %463 = vmatprep.mubr.bf16.mxu0 0
    %464 = vmatmul.mubr.bf16.gmra.mrb[0].mxu0 %v83
    %v465 = vpop.f32.mrb[0].mxu0
    %v466 = vadd.f32 %v349, %v465
    %v467 = vpop.f32.mrb[0].mxu0
    %v468 = vpop.f32.mrb[0].mxu0
    %v469 = vadd.f32 %v349, %v468
    %v470 = vpop.f32.mrb[0].mxu0
    %471 = vmatprep.mubr.bf16.mxu0 0
    %472 = vmatmul.mubr.bf16.gmra.mrb[0].mxu0 %v84
    %v473 = vpop.f32.mrb[0].mxu0
    %v474 = vadd.f32 %v349, %v473
    %v475 = vpop.f32.mrb[0].mxu0
    %v476 = vpop.f32.mrb[0].mxu0
    %v477 = vadd.f32 %v349, %v476
    %v478 = vpop.f32.mrb[0].mxu0
    %479 = vmatprep.mubr.bf16.mxu0 0
    %480 = vmatmul.mubr.bf16.gmra.mrb[0].mxu0 %v85
    %v481 = vpop.f32.mrb[0].mxu0
    %v482 = vadd.f32 %v349, %v481
    %v483 = vpop.f32.mrb[0].mxu0
    %v484 = vpop.f32.mrb[0].mxu0
    %v485 = vadd.f32 %v349, %v484
    %v486 = vpop.f32.mrb[0].mxu0
    %487 = vmatprep.mubr.bf16.mxu0 0
    %488 = vmatmul.mubr.bf16.gmra.mrb[0].mxu0 %v86
    %v489 = vpop.f32.mrb[0].mxu0
    %v490 = vadd.f32 %v349, %v489
    %v491 = vpop.f32.mrb[0].mxu0
    %v492 = vpop.f32.mrb[0].mxu0
    %v493 = vadd.f32 %v349, %v492
    %v494 = vpop.f32.mrb[0].mxu0
    %495 = vdwg.mxu0
    %496 = vst [vmem:[#allocation9] sm:$0xff] %v434
    %497 = vst [vmem:[#allocation9 + $0x8] sm:$0xff] %v437
    %498 = vst [vmem:[#allocation9 + $0x10] sm:$0xff] %v442
    %499 = vst [vmem:[#allocation9 + $0x18] sm:$0xff] %v445
    %500 = vst [vmem:[#allocation9 + $0x20] sm:$0xff] %v450
    %501 = vst [vmem:[#allocation9 + $0x28] sm:$0xff] %v453
    %502 = vst [vmem:[#allocation9 + $0x30] sm:$0xff] %v458
    %503 = vst [vmem:[#allocation9 + $0x38] sm:$0xff] %v461
    %504 = vst [vmem:[#allocation9 + $0x40] sm:$0xff] %v466
    %505 = vst [vmem:[#allocation9 + $0x48] sm:$0xff] %v469
    %506 = vst [vmem:[#allocation9 + $0x50] sm:$0xff] %v474
    %507 = vst [vmem:[#allocation9 + $0x58] sm:$0xff] %v477
    %508 = vst [vmem:[#allocation9 + $0x60] sm:$0xff] %v482
    %509 = vst [vmem:[#allocation9 + $0x68] sm:$0xff] %v485
    %510 = vst [vmem:[#allocation9 + $0x70] sm:$0xff] %v490
    %511 = vst [vmem:[#allocation9 + $0x78] sm:$0xff] %v493
    // Predicated region
    $region30: #{tpu_custom_call.1} parent=1 // pred_check
      _
    $region31: #{tpu_custom_call.1} parent=1 // pred_check_branch
      %513 = sbr.rel (0) target = $region33
    $region32: #{tpu_custom_call.1} parent=1 // pred_region
      %s515 = ssub.s32 1024, 1024
      %516 = vsyncadd [#allocation4], %s515
      %s517 = sshll.u32 [#allocation8], 4
      %s518 = int_to_ptr.vmem [resolvable:$true] %s517
      %523 = dma.vmem_to_hbm [thread:$0]  %s518, 1024, %s4, [#allocation4], 64, 64, 4
    $region33: #{tpu_custom_call.1} parent=1 // pred_fallthru
      _
    // Predicated region
    $region34: #{tpu_custom_call.1} parent=1 // pred_check
      _
    $region35: #{tpu_custom_call.1} parent=1 // pred_check_branch
      %525 = sbr.rel (0) target = $region37
    $region36: #{tpu_custom_call.1} parent=1 // pred_region
      %s527 = ssub.s32 2048, 2048
      %528 = vsyncadd [#allocation10], %s527
      %s529 = sshll.u32 [#allocation9], 4
      %s530 = int_to_ptr.vmem [resolvable:$true] %s529
      %535 = dma.vmem_to_hbm [thread:$0]  %s530, 2048, %s5, [#allocation10], 128, 128, 8
    $region37: #{tpu_custom_call.1} parent=1 // pred_fallthru
      _
    // Predicated region
    $region38: #{tpu_custom_call.1} parent=1 // pred_check
      _
    $region39: #{tpu_custom_call.1} parent=1 // pred_check_branch
      %537 = sbr.rel (0) target = $region41
    $region40: #{tpu_custom_call.1} parent=1 // pred_region
      %538 = dma.done [#allocation4], 1024
    $region41: #{tpu_custom_call.1} parent=1 // pred_fallthru
      _
    // Predicated region
    $region42: #{tpu_custom_call.1} parent=1 // pred_check
      _
    $region43: #{tpu_custom_call.1} parent=1 // pred_check_branch
      %540 = sbr.rel (0) target = $region45
    $region44: #{tpu_custom_call.1} parent=1 // pred_region
      %541 = dma.done [#allocation10], 2048
    $region45: #{tpu_custom_call.1} parent=1 // pred_fallthru
      _
    %542 = vsyncpa [#allocation3], 1
    %543 = vsyncpa [#allocation6], 1
    %544 = vsyncpa [#allocation4], 1
    %545 = vsyncpa [#allocation10], 1

</llo_original>
